<compile_context>
chip_gen: v7x
topology: tpu7x:2x2x1
jax: 0.10.0
libtpu: 0.0.40
codegen_flags: <defaults>
</compile_context>

<pallas_src>
import functools

import jax
import jax.numpy as jnp
from jax.experimental import pallas as pl
from jax.experimental.pallas import tpu as pltpu

EPS = 1e-5


# --------------------------- small static helpers ---------------------------

def _round_up(x, m):
    return (x + m - 1) // m * m


def _pick_tile(dim, cap):
    """Largest multiple-of-128 divisor of `dim` that is <= cap.

    `dim` is always pre-padded to a multiple of 128, so 128 is a safe floor.
    """
    best = 128
    t = 128
    limit = min(dim, cap)
    while t <= limit:
        if dim % t == 0:
            best = t
        t += 128
    return best


def _pad2(x, rows, cols):
    pr = rows - x.shape[0]
    pc = cols - x.shape[1]
    if pr == 0 and pc == 0:
        return x
    return jnp.pad(x, ((0, pr), (0, pc)))


@functools.lru_cache(maxsize=1)
def _hw_config():
    """Generation-aware tile caps + scoped-VMEM limit."""
    kind = ""
    try:
        kind = jax.devices()[0].device_kind.lower()
    except Exception:
        pass
    if "v7" in kind:   # 64 MiB VMEM, 2 TCs/chip: keep 2 shardable axes / >=2 M tiles
        return {"tm": 512, "tn": 512, "tk": 1024,
                "vmem": 48 * 1024 * 1024, "two_cores": True}
    if "v6" in kind:   # 128 MiB VMEM: big tiles, prefer full-K accumulation
        return {"tm": 512, "tn": 512, "tk": 6144,
                "vmem": 100 * 1024 * 1024, "two_cores": False}
    if "v5" in kind:   # v5e: lowest HBM BW -> wide tn cuts redundant A re-reads
        return {"tm": 256, "tn": 512, "tk": 2048,
                "vmem": 64 * 1024 * 1024, "two_cores": False}
    return {"tm": 256, "tn": 256, "tk": 2048, "vmem": None, "two_cores": False}


# ----------------------------- Pallas kernels -------------------------------

def _mm_stats_kernel(a_ref, b_ref, o_ref, sum_ref, sq_ref, acc_ref):
    """K/N-tiled matmul with f32 VMEM accumulator; BN-stat epilogue fused in.

    The per-(M-tile, N-tile) partial channel sum / sum-of-squares are written
    from the f32 accumulator in the k==last branch, so BatchNorm statistics
    cost zero extra HBM reads.  Zero-padded M rows / K cols contribute exact
    zeros, so no masking is needed.
    """
    @pl.when(pl.program_id(2) == 0)
    def _init():
        acc_ref[...] = jnp.zeros_like(acc_ref)

    acc_ref[...] += jnp.dot(a_ref[...], b_ref[...],
                            preferred_element_type=jnp.float32)

    @pl.when(pl.program_id(2) == pl.num_programs(2) - 1)
    def _store():
        y = acc_ref[...]
        o_ref[...] = y.astype(o_ref.dtype)
        sum_ref[...] = jnp.sum(y, axis=0, keepdims=True)
        sq_ref[...] = jnp.sum(y * y, axis=0, keepdims=True)


def matmul_stats_pallas(a, b, cfg, out_dtype=jnp.bfloat16):
    """a: (Mp, K) bf16, b: (K, Np) bf16, all dims 128-aligned.

    Returns (out (Mp, Np), channel_sum (Np,), channel_sumsq (Np,)).
    """
    Mp, K = a.shape
    Kb, Np = b.shape
    assert K == Kb and Mp % 128 == 0 and K % 128 == 0 and Np % 128 == 0

    # Weight-resident tiling: whole K / whole N when they fit the cap, so the
    # B operand is fetched from HBM once and the K loop is a single step.
    tk = K if K <= cfg["tk"] else _pick_tile(K, cfg["tk"])
    tn = Np if Np <= cfg["tn"] else _pick_tile(Np, cfg["tn"])
    tm_cap = cfg["tm"]
    if cfg.get("two_cores") and (Np // tn) < 2 and Mp >= 256:
        # keep >= 2 M tiles so the remaining "parallel" axis feeds both TCs
        tm_cap = min(tm_cap, Mp // 2)
    tm = _pick_tile(Mp, tm_cap)

    grid = (Mp // tm, Np // tn, K // tk)
    out, sums, sqs = pl.pallas_call(
        _mm_stats_kernel,
        out_shape=(jax.ShapeDtypeStruct((Mp, Np), out_dtype),
                   jax.ShapeDtypeStruct((Mp // tm, Np), jnp.float32),
                   jax.ShapeDtypeStruct((Mp // tm, Np), jnp.float32)),
        grid=grid,
        in_specs=[pl.BlockSpec((tm, tk), lambda i, j, k: (i, k)),
                  pl.BlockSpec((tk, tn), lambda i, j, k: (k, j))],
        out_specs=(pl.BlockSpec((tm, tn), lambda i, j, k: (i, j)),
                   pl.BlockSpec((1, tn), lambda i, j, k: (i, j)),
                   pl.BlockSpec((1, tn), lambda i, j, k: (i, j))),
        scratch_shapes=[pltpu.VMEM((tm, tn), jnp.float32)],
        compiler_params=pltpu.CompilerParams(
            dimension_semantics=("parallel", "parallel", "arbitrary"),
            vmem_limit_bytes=cfg["vmem"]),
    )(a, b)
    # Tiny (num_M_tiles, Cp) reduction in plain JAX.
    return out, jnp.sum(sums, axis=0), jnp.sum(sqs, axis=0)


def _residual_kernel(r_ref, s_ref, ar_ref, br_ref, as_ref, bs_ref, o_ref):
    r = r_ref[...].astype(jnp.float32) * ar_ref[...] + br_ref[...]
    s = s_ref[...].astype(jnp.float32) * as_ref[...] + bs_ref[...]
    o_ref[...] = jnp.maximum(r + s, 0.0).astype(o_ref.dtype)


def residual_out_pallas(r, s, scale_r, shift_r, scale_s, shift_s, cfg,
                        out_dtype=jnp.bfloat16):
    """Fused bn2(residual) + bn_ds(shortcut) + add + final ReLU, one HBM pass."""
    Mp, Cp = r.shape
    tm = _pick_tile(Mp, 1024)
    slab = pl.BlockSpec((tm, Cp), lambda i: (i, 0))
    vec = pl.BlockSpec((1, Cp), lambda i: (0, 0))
    return pl.pallas_call(
        _residual_kernel,
        out_shape=jax.ShapeDtypeStruct((Mp, Cp), out_dtype),
        grid=(Mp // tm,),
        in_specs=[slab, slab, vec, vec, vec, vec],
        out_specs=slab,
        compiler_params=pltpu.CompilerParams(
            dimension_semantics=("parallel",),
            vmem_limit_bytes=cfg["vmem"]),
    )(r, s, scale_r, shift_r, scale_s, shift_s)


# ------------------------------ conv glue (JAX) ------------------------------

def _im2col_3x3(x_nhwc, stride):
    """x: (N, H, W, C) -> (N*Ho*Wo, 9*C).  pad=1, kernel=3."""
    N, H, W, C = x_nhwc.shape
    xp = jnp.pad(x_nhwc, ((0, 0), (1, 1), (1, 1), (0, 0)))
    Ho = (H - 1) // stride + 1
    Wo = (W - 1) // stride + 1
    patches = []
    for dh in range(3):
        for dw in range(3):
            patches.append(
                xp[:, dh:dh + stride * Ho:stride, dw:dw + stride * Wo:stride, :])
    cols = jnp.stack(patches, axis=3)              # (N, Ho, Wo, 9, C)
    return cols.reshape(N * Ho * Wo, 9 * C)


def _w3x3_to_mat(w, kp, cp):
    """PyTorch (Cout, Cin, 3, 3) -> (Kp, Cp) matching im2col ordering."""
    cout, cin, kh, kw = w.shape
    wm = jnp.transpose(w, (2, 3, 1, 0)).reshape(kh * kw * cin, cout)
    return _pad2(wm, kp, cp).astype(jnp.bfloat16)


def conv3x3_pallas(x_nhwc, w, stride, Mp, Cp, cfg):
    cols = _im2col_3x3(x_nhwc, stride)                       # (M, 9*Cin)
    Kp = _round_up(cols.shape[1], 128)
    a = _pad2(cols, Mp, Kp)
    return matmul_stats_pallas(a, _w3x3_to_mat(w, Kp, Cp), cfg)


def conv1x1_pallas(x_nhwc, w, stride, Mp, Cp, cfg):
    xs = x_nhwc[:, ::stride, ::stride, :]
    N, Ho, Wo, Cin = xs.shape
    Kp = _round_up(Cin, 128)
    a = _pad2(xs.reshape(N * Ho * Wo, Cin), Mp, Kp)
    wm = _pad2(jnp.transpose(w[:, :, 0, 0], (1, 0)), Kp, Cp).astype(jnp.bfloat16)
    return matmul_stats_pallas(a, wm, cfg)


def _bn_scale_shift(ch_sum, ch_sumsq, m_valid, gamma, beta, Cp):
    """Fold training-mode BN (biased batch variance) into per-channel scale/shift."""
    n_ch = gamma.size
    g = jnp.pad(gamma.reshape(-1).astype(jnp.float32), (0, Cp - n_ch))
    b = jnp.pad(beta.reshape(-1).astype(jnp.float32), (0, Cp - n_ch))
    mean = ch_sum / m_valid
    var = jnp.maximum(ch_sumsq / m_valid - mean * mean, 0.0)
    scale = g * jax.lax.rsqrt(var + EPS)
    shift = b - mean * scale
    return scale.reshape(1, Cp), shift.reshape(1, Cp)


# ------------------------------- BasicBlock ---------------------------------

def basic_block_forward(x_nchw, params, stride):
    """BasicBlock forward: x (N, Cin, H, W) -> (N, Cout, Ho, Wo)."""
    N, Cin, H, W = x_nchw.shape
    Cout = params["w1"].shape[0]
    Cp = _round_up(Cout, 128)
    cfg = _hw_config()

    Ho = (H - 1) // stride + 1         # conv3x3 pad=1 output spatial size
    Wo = (W - 1) // stride + 1
    M = N * Ho * Wo
    Mp = _round_up(M, 128)             # pad to 128 rows only (not to tm)

    x = jnp.transpose(x_nchw, (0, 2, 3, 1)).astype(jnp.bfloat16)   # NHWC bf16

    # conv1 (BN stats fused into the matmul epilogue)
    r1, s1, ss1 = conv3x3_pallas(x, params["w1"], stride, Mp, Cp, cfg)
    scale1, shift1 = _bn_scale_shift(s1, ss1, M, params["g1"], params["b1"], Cp)

    # bn1 + ReLU folded into the im2col expression feeding conv2 (XLA fuses
    # this elementwise work into the gather/copy -> no standalone HBM pass).
    y1 = jnp.maximum(r1.astype(jnp.float32) * scale1 + shift1, 0.0)
    y1 = y1[:M, :Cout].astype(jnp.bfloat16).reshape(N, Ho, Wo, Cout)

    # conv2 (bn2 normalization deferred into the fused residual epilogue)
    r2, s2, ss2 = conv3x3_pallas(y1, params["w2"], 1, Mp, Cp, cfg)
    scale2, shift2 = _bn_scale_shift(s2, ss2, M, params["g2"], params["b2"], Cp)

    # shortcut branch
    if params.get("w_ds") is not None:
        shortcut, s3, ss3 = conv1x1_pallas(x, params["w_ds"], stride, Mp, Cp, cfg)
        scale_s, shift_s = _bn_scale_shift(
            s3, ss3, M, params["g_ds"], params["b_ds"], Cp)
    else:  # identity shortcut (Cin == Cout, stride == 1)
        shortcut = _pad2(x.reshape(N * H * W, Cin), Mp, Cp)
        scale_s = jnp.ones((1, Cp), jnp.float32)
        shift_s = jnp.zeros((1, Cp), jnp.float32)

    # fused: bn2(r2) + bn_ds(shortcut) + add + final ReLU, bf16 output
    out = residual_out_pallas(r2, shortcut, scale2, shift2, scale_s, shift_s,
                              cfg, out_dtype=jnp.bfloat16)

    out = out[:M, :Cout].reshape(N, Ho, Wo, Cout)
    # NOTE: when chaining NHWC blocks, skip this transpose/f32 cast; it is the
    # external PyTorch-compatible NCHW boundary only.
    return jnp.transpose(out, (0, 3, 1, 2)).astype(jnp.float32)


def make_params(key, in_chan, out_chan, stride):
    k1, k2, k3, k4, k5 = jax.random.split(key, 5)
    params = {
        "w1": 0.1 * jax.random.normal(k1, (out_chan, in_chan, 3, 3), jnp.float32),
        "g1": 1.0 + 0.05 * jax.random.normal(k3, (1, out_chan), jnp.float32),
        "b1": 0.05 * jax.random.normal(k4, (1, out_chan), jnp.float32),
        "w2": 0.1 * jax.random.normal(k2, (out_chan, out_chan, 3, 3), jnp.float32),
        "g2": jnp.ones((1, out_chan), jnp.float32),
        "b2": jnp.zeros((1, out_chan), jnp.float32),
        "w_ds": None,
    }
    if in_chan != out_chan or stride != 1:
        params["w_ds"] = 0.1 * jax.random.normal(
            k5, (out_chan, in_chan, 1, 1), jnp.float32)
        params["g_ds"] = jnp.ones((1, out_chan), jnp.float32)
        params["b_ds"] = jnp.zeros((1, out_chan), jnp.float32)
    return params


# --------------------------- plain-JAX reference ----------------------------

def _reference_forward(x, params, stride):
    def conv(x, w, s, pad):
        return jax.lax.conv_general_dilated(
            x, w, window_strides=(s, s), padding=[(pad, pad), (pad, pad)],
            dimension_numbers=("NCHW", "OIHW", "NCHW"))

    def bn(x, g, b):
        mean = jnp.mean(x, axis=(0, 2, 3), keepdims=True)
        var = jnp.mean((x - mean) ** 2, axis=(0, 2, 3), keepdims=True)
        return ((x - mean) * jax.lax.rsqrt(var + EPS)
                * g.reshape(1, -1, 1, 1) + b.reshape(1, -1, 1, 1))

    r = conv(x, params["w1"], stride, 1)
    r = jnp.maximum(bn(r, params["g1"], params["b1"]), 0.0)
    r = conv(r, params["w2"], 1, 1)
    r = bn(r, params["g2"], params["b2"])
    if params.get("w_ds") is not None:
        s = conv(x, params["w_ds"], stride, 0)
        s = bn(s, params["g_ds"], params["b_ds"])
    else:
        s = x
    return jnp.maximum(r + s, 0.0)


if __name__ == "__main__":
    key = jax.random.PRNGKey(0)
    kx, kp, kx2, kp2 = jax.random.split(key, 4)

    # --- test 1: downsample path (stride 2, channel change) ---
    N, in_chan, H, W = 2, 4, 16, 16
    out_chan, stride = 8, 2
    x = jax.random.normal(kx, (N, in_chan, H, W), jnp.float32)
    params = make_params(kp, in_chan, out_chan, stride)

    fwd = jax.jit(functools.partial(basic_block_forward, stride=stride))
    y = fwd(x, params)
    jax.block_until_ready(y)

    expected = (N, out_chan, (H - 1) // stride + 1, (W - 1) // stride + 1)
    assert y.shape == expected, (y.shape, expected)
    assert bool(jnp.all(y >= 0.0))                      # final ReLU
    y_ref = _reference_forward(x, params, stride)
    assert float(jnp.max(jnp.abs(y - y_ref))) < 0.15    # bf16 tolerance

    # --- test 2: identity shortcut (stride 1, same channels) ---
    x2 = jax.random.normal(kx2, (2, 8, 16, 16), jnp.float32)
    params2 = make_params(kp2, 8, 8, 1)
    fwd2 = jax.jit(functools.partial(basic_block_forward, stride=1))
    y2 = fwd2(x2, params2)
    jax.block_until_ready(y2)

    assert y2.shape == (2, 8, 16, 16), y2.shape
    assert bool(jnp.all(y2 >= 0.0))
    y2_ref = _reference_forward(x2, params2, 1)
    assert float(jnp.max(jnp.abs(y2 - y2_ref))) < 0.15

    print("KERNEL_OK")
</pallas_src>

<mosaic_0001>
module attributes {stable_mosaic.version = 11 : i64} {
  func.func @_mm_stats_kernel(%arg0: i32, %arg1: i32, %arg2: i32, %arg3: memref<128x128xbf16, #tpu.memory_space<vmem>>, %arg4: memref<128x128xbf16, #tpu.memory_space<vmem>>, %arg5: memref<128x128xbf16, #tpu.memory_space<vmem>>, %arg6: memref<1x128xf32, #tpu.memory_space<vmem>>, %arg7: memref<1x128xf32, #tpu.memory_space<vmem>>, %arg8: memref<128x128xf32, #tpu.memory_space<vmem>>) attributes {dimension_semantics = [#tpu.dimension_semantics<parallel>, #tpu.dimension_semantics<parallel>, #tpu.dimension_semantics<arbitrary>], iteration_bounds = array<i64: 1, 1, 1>, scalar_prefetch = 0 : i64, scratch_operands = 1 : i64, tpu.core_type = #tpu.core_type<tc>, window_params = [{transform_indices = @transform_0, window_bounds = array<i64: 128, 128>}, {transform_indices = @transform_1, window_bounds = array<i64: 128, 128>}, {transform_indices = @transform_2, window_bounds = array<i64: 128, 128>}, {transform_indices = @transform_3, window_bounds = array<i64: 1, 128>}, {transform_indices = @transform_4, window_bounds = array<i64: 1, 128>}]} {
    %c0_i32 = arith.constant 0 : i32
    %0 = arith.cmpi eq, %arg2, %c0_i32 : i32
    %1 = arith.extui %0 : i1 to i32
    %c0_i32_0 = arith.constant 0 : i32
    %2 = arith.cmpi ne, %1, %c0_i32_0 : i32
    scf.if %2 {
      %cst_10 = arith.constant 0.000000e+00 : f32
      %12 = vector.broadcast %cst_10 : f32 to vector<128x128xf32>
      %c0_11 = arith.constant 0 : index
      %c0_12 = arith.constant 0 : index
      %13 = vector.load %arg8[%c0_11, %c0_12] : memref<128x128xf32, #tpu.memory_space<vmem>>, vector<128x128xf32>
      tpu.vector_store %arg8[%c0_11, %c0_12], %12 {strides = array<i32>} : memref<128x128xf32, #tpu.memory_space<vmem>>, vector<128x128xf32>,
    } else {
    }
    %c0 = arith.constant 0 : index
    %c0_1 = arith.constant 0 : index
    %3 = vector.load %arg8[%c0, %c0_1] : memref<128x128xf32, #tpu.memory_space<vmem>>, vector<128x128xf32>
    %c0_2 = arith.constant 0 : index
    %c0_3 = arith.constant 0 : index
    %4 = vector.load %arg3[%c0_2, %c0_3] : memref<128x128xbf16, #tpu.memory_space<vmem>>, vector<128x128xbf16>
    %c0_4 = arith.constant 0 : index
    %c0_5 = arith.constant 0 : index
    %5 = vector.load %arg4[%c0_4, %c0_5] : memref<128x128xbf16, #tpu.memory_space<vmem>>, vector<128x128xbf16>
    %cst = arith.constant dense<0.000000e+00> : vector<128x128xf32>
    %6 = tpu.matmul %4, %5, %cst {dimension_numbers = #tpu.dot_dimension_numbers<[1], [0], [0], [1], [0, 0, 1, 1], [], []>} : vector<128x128xbf16>, vector<128x128xbf16>, vector<128x128xf32> -> vector<128x128xf32>
    %7 = arith.addf %3, %6 : vector<128x128xf32>
    %c0_6 = arith.constant 0 : index
    %c0_7 = arith.constant 0 : index
    %8 = vector.load %arg8[%c0_6, %c0_7] : memref<128x128xf32, #tpu.memory_space<vmem>>, vector<128x128xf32>
    tpu.vector_store %arg8[%c0_6, %c0_7], %7 {strides = array<i32>} : memref<128x128xf32, #tpu.memory_space<vmem>>, vector<128x128xf32>,
    %c0_i32_8 = arith.constant 0 : i32
    %9 = arith.cmpi eq, %arg2, %c0_i32_8 : i32
    %10 = arith.extui %9 : i1 to i32
    %c0_i32_9 = arith.constant 0 : i32
    %11 = arith.cmpi ne, %10, %c0_i32_9 : i32
    scf.if %11 {
      %c0_10 = arith.constant 0 : index
      %c0_11 = arith.constant 0 : index
      %12 = vector.load %arg8[%c0_10, %c0_11] : memref<128x128xf32, #tpu.memory_space<vmem>>, vector<128x128xf32>
      %13 = arith.truncf %12 : vector<128x128xf32> to vector<128x128xbf16>
      %c0_12 = arith.constant 0 : index
      %c0_13 = arith.constant 0 : index
      %14 = vector.load %arg5[%c0_12, %c0_13] : memref<128x128xbf16, #tpu.memory_space<vmem>>, vector<128x128xbf16>
      tpu.vector_store %arg5[%c0_12, %c0_13], %13 {strides = array<i32>} : memref<128x128xbf16, #tpu.memory_space<vmem>>, vector<128x128xbf16>,
      %cst_14 = arith.constant dense<0.000000e+00> : vector<128xf32>
      %15 = vector.multi_reduction <add>, %12, %cst_14 [0] : vector<128x128xf32> to vector<128xf32>
      %16 = vector.shape_cast %15 : vector<128xf32> to vector<1x128xf32>
      %c0_15 = arith.constant 0 : index
      %c0_16 = arith.constant 0 : index
      %17 = vector.load %arg6[%c0_15, %c0_16] : memref<1x128xf32, #tpu.memory_space<vmem>>, vector<1x128xf32>
      tpu.vector_store %arg6[%c0_15, %c0_16], %16 {strides = array<i32>} : memref<1x128xf32, #tpu.memory_space<vmem>>, vector<1x128xf32>,
      %18 = arith.mulf %12, %12 : vector<128x128xf32>
      %cst_17 = arith.constant dense<0.000000e+00> : vector<128xf32>
      %19 = vector.multi_reduction <add>, %18, %cst_17 [0] : vector<128x128xf32> to vector<128xf32>
      %20 = vector.shape_cast %19 : vector<128xf32> to vector<1x128xf32>
      %c0_18 = arith.constant 0 : index
      %c0_19 = arith.constant 0 : index
      %21 = vector.load %arg7[%c0_18, %c0_19] : memref<1x128xf32, #tpu.memory_space<vmem>>, vector<1x128xf32>
      tpu.vector_store %arg7[%c0_18, %c0_19], %20 {strides = array<i32>} : memref<1x128xf32, #tpu.memory_space<vmem>>, vector<1x128xf32>,
    } else {
    }
    return
  }
  func.func @transform_0(%arg0: i32, %arg1: i32, %arg2: i32) -> (i32, i32) {
    %c0_i32 = arith.constant 0 : i32
    return %arg0, %arg2 : i32, i32
  }
  func.func @transform_1(%arg0: i32, %arg1: i32, %arg2: i32) -> (i32, i32) {
    %c0_i32 = arith.constant 0 : i32
    return %arg2, %arg1 : i32, i32
  }
  func.func @transform_2(%arg0: i32, %arg1: i32, %arg2: i32) -> (i32, i32) {
    %c0_i32 = arith.constant 0 : i32
    return %arg0, %arg1 : i32, i32
  }
  func.func @transform_3(%arg0: i32, %arg1: i32, %arg2: i32) -> (i32, i32) {
    %c0_i32 = arith.constant 0 : i32
    return %arg0, %arg1 : i32, i32
  }
  func.func @transform_4(%arg0: i32, %arg1: i32, %arg2: i32) -> (i32, i32) {
    %c0_i32 = arith.constant 0 : i32
    return %arg0, %arg1 : i32, i32
  }
}

module attributes {stable_mosaic.version = 11 : i64} {
  func.func @_residual_kernel(%arg0: i32, %arg1: memref<128x128xbf16, #tpu.memory_space<vmem>>, %arg2: memref<128x128xbf16, #tpu.memory_space<vmem>>, %arg3: memref<1x128xf32, #tpu.memory_space<vmem>>, %arg4: memref<1x128xf32, #tpu.memory_space<vmem>>, %arg5: memref<1x128xf32, #tpu.memory_space<vmem>>, %arg6: memref<1x128xf32, #tpu.memory_space<vmem>>, %arg7: memref<128x128xbf16, #tpu.memory_space<vmem>>) attributes {dimension_semantics = [#tpu.dimension_semantics<parallel>], iteration_bounds = array<i64: 1>, scalar_prefetch = 0 : i64, scratch_operands = 0 : i64, tpu.core_type = #tpu.core_type<tc>, window_params = [{transform_indices = @transform_0, window_bounds = array<i64: 128, 128>}, {transform_indices = @transform_1, window_bounds = array<i64: 128, 128>}, {pipeline_mode = #tpu.pipeline_mode<synchronous>, transform_indices = @transform_2, window_bounds = array<i64: 1, 128>}, {pipeline_mode = #tpu.pipeline_mode<synchronous>, transform_indices = @transform_3, window_bounds = array<i64: 1, 128>}, {pipeline_mode = #tpu.pipeline_mode<synchronous>, transform_indices = @transform_4, window_bounds = array<i64: 1, 128>}, {pipeline_mode = #tpu.pipeline_mode<synchronous>, transform_indices = @transform_5, window_bounds = array<i64: 1, 128>}, {transform_indices = @transform_6, window_bounds = array<i64: 128, 128>}]} {
    %c0 = arith.constant 0 : index
    %c0_0 = arith.constant 0 : index
    %0 = vector.load %arg1[%c0, %c0_0] : memref<128x128xbf16, #tpu.memory_space<vmem>>, vector<128x128xbf16>
    %1 = arith.extf %0 : vector<128x128xbf16> to vector<128x128xf32>
    %c0_1 = arith.constant 0 : index
    %c0_2 = arith.constant 0 : index
    %2 = vector.load %arg3[%c0_1, %c0_2] : memref<1x128xf32, #tpu.memory_space<vmem>>, vector<1x128xf32>
    %3 = vector.broadcast %2 : vector<1x128xf32> to vector<128x128xf32>
    %4 = arith.mulf %1, %3 : vector<128x128xf32>
    %c0_3 = arith.constant 0 : index
    %c0_4 = arith.constant 0 : index
    %5 = vector.load %arg4[%c0_3, %c0_4] : memref<1x128xf32, #tpu.memory_space<vmem>>, vector<1x128xf32>
    %6 = vector.broadcast %5 : vector<1x128xf32> to vector<128x128xf32>
    %7 = arith.addf %4, %6 : vector<128x128xf32>
    %c0_5 = arith.constant 0 : index
    %c0_6 = arith.constant 0 : index
    %8 = vector.load %arg2[%c0_5, %c0_6] : memref<128x128xbf16, #tpu.memory_space<vmem>>, vector<128x128xbf16>
    %9 = arith.extf %8 : vector<128x128xbf16> to vector<128x128xf32>
    %c0_7 = arith.constant 0 : index
    %c0_8 = arith.constant 0 : index
    %10 = vector.load %arg5[%c0_7, %c0_8] : memref<1x128xf32, #tpu.memory_space<vmem>>, vector<1x128xf32>
    %11 = vector.broadcast %10 : vector<1x128xf32> to vector<128x128xf32>
    %12 = arith.mulf %9, %11 : vector<128x128xf32>
    %c0_9 = arith.constant 0 : index
    %c0_10 = arith.constant 0 : index
    %13 = vector.load %arg6[%c0_9, %c0_10] : memref<1x128xf32, #tpu.memory_space<vmem>>, vector<1x128xf32>
    %14 = vector.broadcast %13 : vector<1x128xf32> to vector<128x128xf32>
    %15 = arith.addf %12, %14 : vector<128x128xf32>
    %16 = arith.addf %7, %15 : vector<128x128xf32>
    %cst = arith.constant 0.000000e+00 : f32
    %17 = vector.broadcast %cst : f32 to vector<128x128xf32>
    %18 = arith.maximumf %16, %17 : vector<128x128xf32>
    %19 = arith.truncf %18 : vector<128x128xf32> to vector<128x128xbf16>
    %c0_11 = arith.constant 0 : index
    %c0_12 = arith.constant 0 : index
    %20 = vector.load %arg7[%c0_11, %c0_12] : memref<128x128xbf16, #tpu.memory_space<vmem>>, vector<128x128xbf16>
    tpu.vector_store %arg7[%c0_11, %c0_12], %19 {strides = array<i32>} : memref<128x128xbf16, #tpu.memory_space<vmem>>, vector<128x128xbf16>,
    return
  }
  func.func @transform_0(%arg0: i32) -> (i32, i32) {
    %c0_i32 = arith.constant 0 : i32
    %c0_i32_0 = arith.constant 0 : i32
    return %arg0, %c0_i32 : i32, i32
  }
  func.func @transform_1(%arg0: i32) -> (i32, i32) {
    %c0_i32 = arith.constant 0 : i32
    %c0_i32_0 = arith.constant 0 : i32
    return %arg0, %c0_i32 : i32, i32
  }
  func.func @transform_2(%arg0: i32) -> (i32, i32) {
    %c0_i32 = arith.constant 0 : i32
    %c0_i32_0 = arith.constant 0 : i32
    %c0_i32_1 = arith.constant 0 : i32
    return %c0_i32, %c0_i32_0 : i32, i32
  }
  func.func @transform_3(%arg0: i32) -> (i32, i32) {
    %c0_i32 = arith.constant 0 : i32
    %c0_i32_0 = arith.constant 0 : i32
    %c0_i32_1 = arith.constant 0 : i32
    return %c0_i32, %c0_i32_0 : i32, i32
  }
  func.func @transform_4(%arg0: i32) -> (i32, i32) {
    %c0_i32 = arith.constant 0 : i32
    %c0_i32_0 = arith.constant 0 : i32
    %c0_i32_1 = arith.constant 0 : i32
    return %c0_i32, %c0_i32_0 : i32, i32
  }
  func.func @transform_5(%arg0: i32) -> (i32, i32) {
    %c0_i32 = arith.constant 0 : i32
    %c0_i32_0 = arith.constant 0 : i32
    %c0_i32_1 = arith.constant 0 : i32
    return %c0_i32, %c0_i32_0 : i32, i32
  }
  func.func @transform_6(%arg0: i32) -> (i32, i32) {
    %c0_i32 = arith.constant 0 : i32
    %c0_i32_0 = arith.constant 0 : i32
    return %arg0, %c0_i32 : i32, i32
  }
}

</mosaic_0001>

<llo_original>
// kernel: basic_block_forward.4
$region0: #{basic_block_forward.4}
  #allocation0 [shape = 'u32[]', space=smem, size = 0x4, offset = 0x4, fixed_abs, tag = 'smem constant byte address 0x4 - core index']
  #allocation1 [shape = 'u32[144,128]{1,0:T(1,128)}', space=vmem, size = 0x12000, scoped, tag = 'internal scratch']
  #allocation2 [shape = 'f32[128,128]{1,0:T(8,128)}', space=vmem, size = 0x10000, scoped, tag = 'scratch operand']
  %s0 = inlined_call_operand.vmem [shape: bf16[128,128], index: 0, kind: input, shape index: {}]
  %s1 = inlined_call_operand.vmem [shape: bf16[128,128], index: 1, kind: input, shape index: {}]
  %s2 = inlined_call_operand.vmem [shape: bf16[128,128], index: 2, kind: output, shape index: {0}]
  %s3 = inlined_call_operand.vmem [shape: f32[1,128], index: 3, kind: output, shape index: {1}]
  %s4 = inlined_call_operand.vmem [shape: f32[1,128], index: 4, kind: output, shape index: {2}]
  %5 = xla_tuple %s2, %s3, %s4
  %s6 = sld [smem:[#allocation0]]
  $region42: #{basic_block_forward.4} parent=0
    _
  %s8 = ssub.s32 1, %s6
  %s9 = scalar_select 0, %s8, %s6
  // Predicated region
  $region2: #{basic_block_forward.4} parent=0 // pred_check
    _
  $region3: #{basic_block_forward.4} parent=0 // pred_check_branch
    %11 = sbr.rel (0) target = $region5
  $region4: #{basic_block_forward.4} parent=0 // pred_region
    _
  $region5: #{basic_block_forward.4} parent=0 // pred_fallthru
    _
  // Predicated region
  $region6: #{basic_block_forward.4} parent=0 // pred_check
    _
  $region7: #{basic_block_forward.4} parent=0 // pred_check_branch
    %13 = sbr.rel (0) target = $region9
  $region8: #{basic_block_forward.4} parent=0 // pred_region
    _
  $region9: #{basic_block_forward.4} parent=0 // pred_fallthru
    _
  %p15 = scmp.eq.s32.totalorder 0, 0
  // Predicated region
  $region10: #{basic_block_forward.4} parent=0 // pred_check
    %p16 = pneg %p15
  $region11: #{basic_block_forward.4} parent=0 // pred_check_branch
    %18 = sbr.rel (%p16) target = $region13
  $region12: #{basic_block_forward.4} parent=0 // pred_region
    %19 = vst [vmem:[#allocation2] sm:$0xff] 0.0
    %20 = vst [vmem:[#allocation2 + $0x8] sm:$0xff] 0.0
    %21 = vst [vmem:[#allocation2 + $0x10] sm:$0xff] 0.0
    %22 = vst [vmem:[#allocation2 + $0x18] sm:$0xff] 0.0
    %23 = vst [vmem:[#allocation2 + $0x20] sm:$0xff] 0.0
    %24 = vst [vmem:[#allocation2 + $0x28] sm:$0xff] 0.0
    %25 = vst [vmem:[#allocation2 + $0x30] sm:$0xff] 0.0
    %26 = vst [vmem:[#allocation2 + $0x38] sm:$0xff] 0.0
    %27 = vst [vmem:[#allocation2 + $0x40] sm:$0xff] 0.0
    %28 = vst [vmem:[#allocation2 + $0x48] sm:$0xff] 0.0
    %29 = vst [vmem:[#allocation2 + $0x50] sm:$0xff] 0.0
    %30 = vst [vmem:[#allocation2 + $0x58] sm:$0xff] 0.0
    %31 = vst [vmem:[#allocation2 + $0x60] sm:$0xff] 0.0
    %32 = vst [vmem:[#allocation2 + $0x68] sm:$0xff] 0.0
    %33 = vst [vmem:[#allocation2 + $0x70] sm:$0xff] 0.0
    %34 = vst [vmem:[#allocation2 + $0x78] sm:$0xff] 0.0
  $region13: #{basic_block_forward.4} parent=0 // pred_fallthru
    _
  %v35 = vld [vmem:[#allocation2] sm:$0xff]
  %v36 = vld [vmem:[#allocation2 + $0x8] sm:$0xff]
  %v37 = vld [vmem:[#allocation2 + $0x10] sm:$0xff]
  %v38 = vld [vmem:[#allocation2 + $0x18] sm:$0xff]
  %v39 = vld [vmem:[#allocation2 + $0x20] sm:$0xff]
  %v40 = vld [vmem:[#allocation2 + $0x28] sm:$0xff]
  %v41 = vld [vmem:[#allocation2 + $0x30] sm:$0xff]
  %v42 = vld [vmem:[#allocation2 + $0x38] sm:$0xff]
  %v43 = vld [vmem:[#allocation2 + $0x40] sm:$0xff]
  %v44 = vld [vmem:[#allocation2 + $0x48] sm:$0xff]
  %v45 = vld [vmem:[#allocation2 + $0x50] sm:$0xff]
  %v46 = vld [vmem:[#allocation2 + $0x58] sm:$0xff]
  %v47 = vld [vmem:[#allocation2 + $0x60] sm:$0xff]
  %v48 = vld [vmem:[#allocation2 + $0x68] sm:$0xff]
  %v49 = vld [vmem:[#allocation2 + $0x70] sm:$0xff]
  %v50 = vld [vmem:[#allocation2 + $0x78] sm:$0xff]
  %v51 = vld [vmem:[%s0] sm:$0xf]
  %v52 = vld [vmem:[%s0 + $0x4] sm:$0xf]
  %v53 = vld [vmem:[%s0 + $0x8] sm:$0xf]
  %v54 = vld [vmem:[%s0 + $0xc] sm:$0xf]
  %v55 = vld [vmem:[%s0 + $0x10] sm:$0xf]
  %v56 = vld [vmem:[%s0 + $0x14] sm:$0xf]
  %v57 = vld [vmem:[%s0 + $0x18] sm:$0xf]
  %v58 = vld [vmem:[%s0 + $0x1c] sm:$0xf]
  %v59 = vld [vmem:[%s0 + $0x20] sm:$0xf]
  %v60 = vld [vmem:[%s0 + $0x24] sm:$0xf]
  %v61 = vld [vmem:[%s0 + $0x28] sm:$0xf]
  %v62 = vld [vmem:[%s0 + $0x2c] sm:$0xf]
  %v63 = vld [vmem:[%s0 + $0x30] sm:$0xf]
  %v64 = vld [vmem:[%s0 + $0x34] sm:$0xf]
  %v65 = vld [vmem:[%s0 + $0x38] sm:$0xf]
  %v66 = vld [vmem:[%s0 + $0x3c] sm:$0xf]
  %v67 = vld [vmem:[%s1] sm:$0xf]
  %v68 = vld [vmem:[%s1 + $0x4] sm:$0xf]
  %v69 = vld [vmem:[%s1 + $0x8] sm:$0xf]
  %v70 = vld [vmem:[%s1 + $0xc] sm:$0xf]
  %v71 = vld [vmem:[%s1 + $0x10] sm:$0xf]
  %v72 = vld [vmem:[%s1 + $0x14] sm:$0xf]
  %v73 = vld [vmem:[%s1 + $0x18] sm:$0xf]
  %v74 = vld [vmem:[%s1 + $0x1c] sm:$0xf]
  %v75 = vld [vmem:[%s1 + $0x20] sm:$0xf]
  %v76 = vld [vmem:[%s1 + $0x24] sm:$0xf]
  %v77 = vld [vmem:[%s1 + $0x28] sm:$0xf]
  %v78 = vld [vmem:[%s1 + $0x2c] sm:$0xf]
  %v79 = vld [vmem:[%s1 + $0x30] sm:$0xf]
  %v80 = vld [vmem:[%s1 + $0x34] sm:$0xf]
  %v81 = vld [vmem:[%s1 + $0x38] sm:$0xf]
  %v82 = vld [vmem:[%s1 + $0x3c] sm:$0xf]
  %v99 = vunpack.c.l.b16 %v51
  %v100 = vunpack.c.l.b16 %v52
  %v101 = vunpack.c.l.b16 %v53
  %v102 = vunpack.c.l.b16 %v54
  %v103 = vunpack.c.l.b16 %v55
  %v104 = vunpack.c.l.b16 %v56
  %v105 = vunpack.c.l.b16 %v57
  %v106 = vunpack.c.l.b16 %v58
  %v107 = vunpack.c.l.b16 %v59
  %v108 = vunpack.c.l.b16 %v60
  %v109 = vunpack.c.l.b16 %v61
  %v110 = vunpack.c.l.b16 %v62
  %v111 = vunpack.c.l.b16 %v63
  %v112 = vunpack.c.l.b16 %v64
  %v113 = vunpack.c.l.b16 %v65
  %v114 = vunpack.c.l.b16 %v66
  %v115 = vpack.c.b16 %v100, %v99
  %v116 = vpack.c.b16 %v102, %v101
  %v117 = vpack.c.b16 %v104, %v103
  %v118 = vpack.c.b16 %v106, %v105
  %v119 = vpack.c.b16 %v108, %v107
  %v120 = vpack.c.b16 %v110, %v109
  %v121 = vpack.c.b16 %v112, %v111
  %v122 = vpack.c.b16 %v114, %v113
  %v147 = vunpack.c.l.b16 %v67
  %v148 = vunpack.c.l.b16 %v68
  %v149 = vunpack.c.l.b16 %v69
  %v150 = vunpack.c.l.b16 %v70
  %v151 = vunpack.c.l.b16 %v71
  %v152 = vunpack.c.l.b16 %v72
  %v153 = vunpack.c.l.b16 %v73
  %v154 = vunpack.c.l.b16 %v74
  %v155 = vunpack.c.l.b16 %v75
  %v156 = vunpack.c.l.b16 %v76
  %v157 = vunpack.c.l.b16 %v77
  %v158 = vunpack.c.l.b16 %v78
  %v159 = vunpack.c.l.b16 %v79
  %v160 = vunpack.c.l.b16 %v80
  %v161 = vunpack.c.l.b16 %v81
  %v162 = vunpack.c.l.b16 %v82
  %v163 = vpack.c.b16 %v148, %v147
  %v164 = vpack.c.b16 %v150, %v149
  %v165 = vpack.c.b16 %v152, %v151
  %v166 = vpack.c.b16 %v154, %v153
  %v167 = vpack.c.b16 %v156, %v155
  %v168 = vpack.c.b16 %v158, %v157
  %v169 = vpack.c.b16 %v160, %v159
  %v170 = vpack.c.b16 %v162, %v161
  %179 = vmatprep.subr.bf16.mxu0 0
  %180 = vmatpush1.bf16.msra.mxu0 %v163
  %181 = vmatprep.subr.bf16.mxu0 0
  %182 = vmatpush1.bf16.msra.mxu0 %v164
  %183 = vmatprep.subr.bf16.mxu0 0
  %184 = vmatpush1.bf16.msra.mxu0 %v165
  %185 = vmatprep.subr.bf16.mxu0 0
  %186 = vmatpush1.bf16.msra.mxu0 %v166
  %187 = vmatprep.subr.bf16.mxu0 0
  %188 = vmatpush1.bf16.msra.mxu0 %v167
  %189 = vmatprep.subr.bf16.mxu0 0
  %190 = vmatpush1.bf16.msra.mxu0 %v168
  %191 = vmatprep.subr.bf16.mxu0 0
  %192 = vmatpush1.bf16.msra.mxu0 %v169
  %193 = vmatprep.subr.bf16.mxu0 0
  %194 = vmatpush1.bf16.msra.mxu0 %v170
  %195 = vmatprep.subr.bf16.mxu0 0
  %196 = vmatpush1.bf16.msra.mxu0 0
  %197 = vmatprep.subr.bf16.mxu0 0
  %198 = vmatpush1.bf16.msra.mxu0 0
  %199 = vmatprep.subr.bf16.mxu0 0
  %200 = vmatpush1.bf16.msra.mxu0 0
  %201 = vmatprep.subr.bf16.mxu0 0
  %202 = vmatpush1.bf16.msra.mxu0 0
  %203 = vmatprep.subr.bf16.mxu0 0
  %204 = vmatpush1.bf16.msra.mxu0 0
  %205 = vmatprep.subr.bf16.mxu0 0
  %206 = vmatpush1.bf16.msra.mxu0 0
  %207 = vmatprep.subr.bf16.mxu0 0
  %208 = vmatpush1.bf16.msra.mxu0 0
  %209 = vmatprep.subr.bf16.mxu0 0
  %210 = vmatpush1.bf16.msra.mxu0 0
  %211 = vmatprep.mubr.bf16.mxu0 0
  %212 = vmatmul.mubr.bf16.gmra.mrb[0].mxu0 %v115
  %v213 = vpop.f32.mrb[0].mxu0
  %v214 = vadd.f32 0.0, %v213
  %v215 = vpop.f32.mrb[0].mxu0
  %v216 = vpop.f32.mrb[0].mxu0
  %v217 = vadd.f32 0.0, %v216
  %v218 = vpop.f32.mrb[0].mxu0
  %219 = vmatprep.mubr.bf16.mxu0 0
  %220 = vmatmul.mubr.bf16.gmra.mrb[0].mxu0 %v116
  %v221 = vpop.f32.mrb[0].mxu0
  %v222 = vadd.f32 0.0, %v221
  %v223 = vpop.f32.mrb[0].mxu0
  %v224 = vpop.f32.mrb[0].mxu0
  %v225 = vadd.f32 0.0, %v224
  %v226 = vpop.f32.mrb[0].mxu0
  %227 = vmatprep.mubr.bf16.mxu0 0
  %228 = vmatmul.mubr.bf16.gmra.mrb[0].mxu0 %v117
  %v229 = vpop.f32.mrb[0].mxu0
  %v230 = vadd.f32 0.0, %v229
  %v231 = vpop.f32.mrb[0].mxu0
  %v232 = vpop.f32.mrb[0].mxu0
  %v233 = vadd.f32 0.0, %v232
  %v234 = vpop.f32.mrb[0].mxu0
  %235 = vmatprep.mubr.bf16.mxu0 0
  %236 = vmatmul.mubr.bf16.gmra.mrb[0].mxu0 %v118
  %v237 = vpop.f32.mrb[0].mxu0
  %v238 = vadd.f32 0.0, %v237
  %v239 = vpop.f32.mrb[0].mxu0
  %v240 = vpop.f32.mrb[0].mxu0
  %v241 = vadd.f32 0.0, %v240
  %v242 = vpop.f32.mrb[0].mxu0
  %243 = vmatprep.mubr.bf16.mxu0 0
  %244 = vmatmul.mubr.bf16.gmra.mrb[0].mxu0 %v119
  %v245 = vpop.f32.mrb[0].mxu0
  %v246 = vadd.f32 0.0, %v245
  %v247 = vpop.f32.mrb[0].mxu0
  %v248 = vpop.f32.mrb[0].mxu0
  %v249 = vadd.f32 0.0, %v248
  %v250 = vpop.f32.mrb[0].mxu0
  %251 = vmatprep.mubr.bf16.mxu0 0
  %252 = vmatmul.mubr.bf16.gmra.mrb[0].mxu0 %v120
  %v253 = vpop.f32.mrb[0].mxu0
  %v254 = vadd.f32 0.0, %v253
  %v255 = vpop.f32.mrb[0].mxu0
  %v256 = vpop.f32.mrb[0].mxu0
  %v257 = vadd.f32 0.0, %v256
  %v258 = vpop.f32.mrb[0].mxu0
  %259 = vmatprep.mubr.bf16.mxu0 0
  %260 = vmatmul.mubr.bf16.gmra.mrb[0].mxu0 %v121
  %v261 = vpop.f32.mrb[0].mxu0
  %v262 = vadd.f32 0.0, %v261
  %v263 = vpop.f32.mrb[0].mxu0
  %v264 = vpop.f32.mrb[0].mxu0
  %v265 = vadd.f32 0.0, %v264
  %v266 = vpop.f32.mrb[0].mxu0
  %267 = vmatprep.mubr.bf16.mxu0 0
  %268 = vmatmul.mubr.bf16.gmra.mrb[0].mxu0 %v122
  %v269 = vpop.f32.mrb[0].mxu0
  %v270 = vadd.f32 0.0, %v269
  %v271 = vpop.f32.mrb[0].mxu0
  %v272 = vpop.f32.mrb[0].mxu0
  %v273 = vadd.f32 0.0, %v272
  %v274 = vpop.f32.mrb[0].mxu0
  %275 = vdwg.mxu0
  %v276 = vadd.f32 %v35, %v214
  %v277 = vadd.f32 %v36, %v217
  %v278 = vadd.f32 %v37, %v222
  %v279 = vadd.f32 %v38, %v225
  %v280 = vadd.f32 %v39, %v230
  %v281 = vadd.f32 %v40, %v233
  %v282 = vadd.f32 %v41, %v238
  %v283 = vadd.f32 %v42, %v241
  %v284 = vadd.f32 %v43, %v246
  %v285 = vadd.f32 %v44, %v249
  %v286 = vadd.f32 %v45, %v254
  %v287 = vadd.f32 %v46, %v257
  %v288 = vadd.f32 %v47, %v262
  %v289 = vadd.f32 %v48, %v265
  %v290 = vadd.f32 %v49, %v270
  %v291 = vadd.f32 %v50, %v273
  %292 = vst [vmem:[#allocation2] sm:$0xff] %v276
  %293 = vst [vmem:[#allocation2 + $0x8] sm:$0xff] %v277
  %294 = vst [vmem:[#allocation2 + $0x10] sm:$0xff] %v278
  %295 = vst [vmem:[#allocation2 + $0x18] sm:$0xff] %v279
  %296 = vst [vmem:[#allocation2 + $0x20] sm:$0xff] %v280
  %297 = vst [vmem:[#allocation2 + $0x28] sm:$0xff] %v281
  %298 = vst [vmem:[#allocation2 + $0x30] sm:$0xff] %v282
  %299 = vst [vmem:[#allocation2 + $0x38] sm:$0xff] %v283
  %300 = vst [vmem:[#allocation2 + $0x40] sm:$0xff] %v284
  %301 = vst [vmem:[#allocation2 + $0x48] sm:$0xff] %v285
  %302 = vst [vmem:[#allocation2 + $0x50] sm:$0xff] %v286
  %303 = vst [vmem:[#allocation2 + $0x58] sm:$0xff] %v287
  %304 = vst [vmem:[#allocation2 + $0x60] sm:$0xff] %v288
  %305 = vst [vmem:[#allocation2 + $0x68] sm:$0xff] %v289
  %306 = vst [vmem:[#allocation2 + $0x70] sm:$0xff] %v290
  %307 = vst [vmem:[#allocation2 + $0x78] sm:$0xff] %v291
  // Predicated region
  $region14: #{basic_block_forward.4} parent=0 // pred_check
    %p308 = pneg %p15
  $region15: #{basic_block_forward.4} parent=0 // pred_check_branch
    %310 = sbr.rel (%p308) target = $region17
  $region16: #{basic_block_forward.4} parent=0 // pred_region
    %v311 = vld [vmem:[#allocation2] sm:$0xff]
    %v312 = vld [vmem:[#allocation2 + $0x8] sm:$0xff]
    %v313 = vld [vmem:[#allocation2 + $0x10] sm:$0xff]
    %v314 = vld [vmem:[#allocation2 + $0x18] sm:$0xff]
    %v315 = vld [vmem:[#allocation2 + $0x20] sm:$0xff]
    %v316 = vld [vmem:[#allocation2 + $0x28] sm:$0xff]
    %v317 = vld [vmem:[#allocation2 + $0x30] sm:$0xff]
    %v318 = vld [vmem:[#allocation2 + $0x38] sm:$0xff]
    %v319 = vld [vmem:[#allocation2 + $0x40] sm:$0xff]
    %v320 = vld [vmem:[#allocation2 + $0x48] sm:$0xff]
    %v321 = vld [vmem:[#allocation2 + $0x50] sm:$0xff]
    %v322 = vld [vmem:[#allocation2 + $0x58] sm:$0xff]
    %v323 = vld [vmem:[#allocation2 + $0x60] sm:$0xff]
    %v324 = vld [vmem:[#allocation2 + $0x68] sm:$0xff]
    %v325 = vld [vmem:[#allocation2 + $0x70] sm:$0xff]
    %v326 = vld [vmem:[#allocation2 + $0x78] sm:$0xff]
    %v327 = vpack.c.bf16 %v312, %v311
    %v328 = vpack.c.bf16 %v314, %v313
    %v329 = vpack.c.bf16 %v316, %v315
    %v330 = vpack.c.bf16 %v318, %v317
    %v331 = vpack.c.bf16 %v320, %v319
    %v332 = vpack.c.bf16 %v322, %v321
    %v333 = vpack.c.bf16 %v324, %v323
    %v334 = vpack.c.bf16 %v326, %v325
    %v343 = vunpack.c.l.b16 %v327
    %v344 = vunpack.c.h.b16 %v327
    %v345 = vunpack.c.l.b16 %v328
    %v346 = vunpack.c.h.b16 %v328
    %v347 = vunpack.c.l.b16 %v329
    %v348 = vunpack.c.h.b16 %v329
    %v349 = vunpack.c.l.b16 %v330
    %v350 = vunpack.c.h.b16 %v330
    %v351 = vunpack.c.l.b16 %v331
    %v352 = vunpack.c.h.b16 %v331
    %v353 = vunpack.c.l.b16 %v332
    %v354 = vunpack.c.h.b16 %v332
    %v355 = vunpack.c.l.b16 %v333
    %v356 = vunpack.c.h.b16 %v333
    %v357 = vunpack.c.l.b16 %v334
    %v358 = vunpack.c.h.b16 %v334
    %v359 = vpack.c.b16 %v343, %v343
    %v360 = vpack.c.b16 %v344, %v344
    %v361 = vpack.c.b16 %v345, %v345
    %v362 = vpack.c.b16 %v346, %v346
    %v363 = vpack.c.b16 %v347, %v347
    %v364 = vpack.c.b16 %v348, %v348
    %v365 = vpack.c.b16 %v349, %v349
    %v366 = vpack.c.b16 %v350, %v350
    %v367 = vpack.c.b16 %v351, %v351
    %v368 = vpack.c.b16 %v352, %v352
    %v369 = vpack.c.b16 %v353, %v353
    %v370 = vpack.c.b16 %v354, %v354
    %v371 = vpack.c.b16 %v355, %v355
    %v372 = vpack.c.b16 %v356, %v356
    %v373 = vpack.c.b16 %v357, %v357
    %v374 = vpack.c.b16 %v358, %v358
    %391 = vst [vmem:[%s2] sm:$0xf] %v359
    %392 = vst [vmem:[%s2 + $0x4] sm:$0xf] %v360
    %393 = vst [vmem:[%s2 + $0x8] sm:$0xf] %v361
    %394 = vst [vmem:[%s2 + $0xc] sm:$0xf] %v362
    %395 = vst [vmem:[%s2 + $0x10] sm:$0xf] %v363
    %396 = vst [vmem:[%s2 + $0x14] sm:$0xf] %v364
    %397 = vst [vmem:[%s2 + $0x18] sm:$0xf] %v365
    %398 = vst [vmem:[%s2 + $0x1c] sm:$0xf] %v366
    %399 = vst [vmem:[%s2 + $0x20] sm:$0xf] %v367
    %400 = vst [vmem:[%s2 + $0x24] sm:$0xf] %v368
    %401 = vst [vmem:[%s2 + $0x28] sm:$0xf] %v369
    %402 = vst [vmem:[%s2 + $0x2c] sm:$0xf] %v370
    %403 = vst [vmem:[%s2 + $0x30] sm:$0xf] %v371
    %404 = vst [vmem:[%s2 + $0x34] sm:$0xf] %v372
    %405 = vst [vmem:[%s2 + $0x38] sm:$0xf] %v373
    %406 = vst [vmem:[%s2 + $0x3c] sm:$0xf] %v374
    %v407 = vadd.f32 %v311, %v312
    %v408 = vadd.f32 %v407, %v313
    %v409 = vadd.f32 %v408, %v314
    %v410 = vadd.f32 %v409, %v315
    %v411 = vadd.f32 %v410, %v316
    %v412 = vadd.f32 %v411, %v317
    %v413 = vadd.f32 %v412, %v318
    %v414 = vadd.f32 %v413, %v319
    %v415 = vadd.f32 %v414, %v320
    %v416 = vadd.f32 %v415, %v321
    %v417 = vadd.f32 %v416, %v322
    %v418 = vadd.f32 %v417, %v323
    %v419 = vadd.f32 %v418, %v324
    %v420 = vadd.f32 %v419, %v325
    %v421 = vadd.f32 %v420, %v326
    %v422 = vrot.slane %v421, 4
    %v423 = vadd.f32 %v421, %v422
    %v424 = vrot.slane %v423, 2
    %v425 = vadd.f32 %v423, %v424
    %v426 = vrot.slane %v425, 1
    %v427 = vadd.f32 %v425, %v426
    %428 = vst [vmem:[%s3] sm:$0x1] %v427
    %v429 = vmul.f32 %v311, %v311
    %v430 = vmul.f32 %v312, %v312
    %v431 = vmul.f32 %v313, %v313
    %v432 = vmul.f32 %v314, %v314
    %v433 = vmul.f32 %v315, %v315
    %v434 = vmul.f32 %v316, %v316
    %v435 = vmul.f32 %v317, %v317
    %v436 = vmul.f32 %v318, %v318
    %v437 = vmul.f32 %v319, %v319
    %v438 = vmul.f32 %v320, %v320
    %v439 = vmul.f32 %v321, %v321
    %v440 = vmul.f32 %v322, %v322
    %v441 = vmul.f32 %v323, %v323
    %v442 = vmul.f32 %v324, %v324
    %v443 = vmul.f32 %v325, %v325
    %v444 = vmul.f32 %v326, %v326
    %v445 = vadd.f32 %v429, %v430
    %v446 = vadd.f32 %v445, %v431
    %v447 = vadd.f32 %v446, %v432
    %v448 = vadd.f32 %v447, %v433
    %v449 = vadd.f32 %v448, %v434
    %v450 = vadd.f32 %v449, %v435
    %v451 = vadd.f32 %v450, %v436
    %v452 = vadd.f32 %v451, %v437
    %v453 = vadd.f32 %v452, %v438
    %v454 = vadd.f32 %v453, %v439
    %v455 = vadd.f32 %v454, %v440
    %v456 = vadd.f32 %v455, %v441
    %v457 = vadd.f32 %v456, %v442
    %v458 = vadd.f32 %v457, %v443
    %v459 = vadd.f32 %v458, %v444
    %v460 = vrot.slane %v459, 4
    %v461 = vadd.f32 %v459, %v460
    %v462 = vrot.slane %v461, 2
    %v463 = vadd.f32 %v461, %v462
    %v464 = vrot.slane %v463, 1
    %v465 = vadd.f32 %v463, %v464
    %466 = vst [vmem:[%s4] sm:$0x1] %v465
  $region17: #{basic_block_forward.4} parent=0 // pred_fallthru
    _
  // Predicated region
  $region18: #{basic_block_forward.4} parent=0 // pred_check
    _
  $region19: #{basic_block_forward.4} parent=0 // pred_check_branch
    %468 = sbr.rel (0) target = $region21
  $region20: #{basic_block_forward.4} parent=0 // pred_region
    _
  $region21: #{basic_block_forward.4} parent=0 // pred_fallthru
    _
  // Predicated region
  $region22: #{basic_block_forward.4} parent=0 // pred_check
    _
  $region23: #{basic_block_forward.4} parent=0 // pred_check_branch
    %470 = sbr.rel (0) target = $region25
  $region24: #{basic_block_forward.4} parent=0 // pred_region
    _
  $region25: #{basic_block_forward.4} parent=0 // pred_fallthru
    _
  // Predicated region
  $region26: #{basic_block_forward.4} parent=0 // pred_check
    _
  $region27: #{basic_block_forward.4} parent=0 // pred_check_branch
    %472 = sbr.rel (0) target = $region29
  $region28: #{basic_block_forward.4} parent=0 // pred_region
    _
  $region29: #{basic_block_forward.4} parent=0 // pred_fallthru
    _
  // Predicated region
  $region30: #{basic_block_forward.4} parent=0 // pred_check
    _
  $region31: #{basic_block_forward.4} parent=0 // pred_check_branch
    %474 = sbr.rel (0) target = $region33
  $region32: #{basic_block_forward.4} parent=0 // pred_region
    _
  $region33: #{basic_block_forward.4} parent=0 // pred_fallthru
    _
  // Predicated region
  $region34: #{basic_block_forward.4} parent=0 // pred_check
    _
  $region35: #{basic_block_forward.4} parent=0 // pred_check_branch
    %476 = sbr.rel (0) target = $region37
  $region36: #{basic_block_forward.4} parent=0 // pred_region
    _
  $region37: #{basic_block_forward.4} parent=0 // pred_fallthru
    _
  // Predicated region
  $region38: #{basic_block_forward.4} parent=0 // pred_check
    _
  $region39: #{basic_block_forward.4} parent=0 // pred_check_branch
    %478 = sbr.rel (0) target = $region41
  $region40: #{basic_block_forward.4} parent=0 // pred_region
    _
  $region41: #{basic_block_forward.4} parent=0 // pred_fallthru
    _

// kernel: basic_block_forward.7
$region0: #{basic_block_forward.7}
  #allocation0 [shape = 'u32[]', space=smem, size = 0x4, offset = 0x4, fixed_abs, tag = 'smem constant byte address 0x4 - core index']
  #allocation1 [shape = 'u32[144,128]{1,0:T(1,128)}', space=vmem, size = 0x12000, scoped, tag = 'internal scratch']
  %s0 = inlined_call_operand.vmem [shape: bf16[128,128], index: 0, kind: input, shape index: {}]
  %s1 = inlined_call_operand.vmem [shape: bf16[128,128], index: 1, kind: input, shape index: {}]
  %s2 = inlined_call_operand.vmem [shape: f32[1,128], index: 2, kind: input, shape index: {}]
  %s3 = inlined_call_operand.vmem [shape: f32[1,128], index: 3, kind: input, shape index: {}]
  %s4 = inlined_call_operand.vmem [shape: f32[1,128], index: 4, kind: input, shape index: {}]
  %s5 = inlined_call_operand.vmem [shape: f32[1,128], index: 5, kind: input, shape index: {}]
  %s6 = inlined_call_operand.vmem [shape: bf16[128,128], index: 6, kind: output, shape index: {}]
  %s7 = sld [smem:[#allocation0]]
  $region34: #{basic_block_forward.7} parent=0
    _
  %s9 = ssub.s32 1, %s7
  %s10 = scalar_select 0, %s9, %s7
  // Predicated region
  $region2: #{basic_block_forward.7} parent=0 // pred_check
    _
  $region3: #{basic_block_forward.7} parent=0 // pred_check_branch
    %12 = sbr.rel (0) target = $region5
  $region4: #{basic_block_forward.7} parent=0 // pred_region
    _
  $region5: #{basic_block_forward.7} parent=0 // pred_fallthru
    _
  // Predicated region
  $region6: #{basic_block_forward.7} parent=0 // pred_check
    _
  $region7: #{basic_block_forward.7} parent=0 // pred_check_branch
    %14 = sbr.rel (0) target = $region9
  $region8: #{basic_block_forward.7} parent=0 // pred_region
    _
  $region9: #{basic_block_forward.7} parent=0 // pred_fallthru
    _
  // Predicated region
  $region10: #{basic_block_forward.7} parent=0 // pred_check
    _
  $region11: #{basic_block_forward.7} parent=0 // pred_check_branch
    %16 = sbr.rel (0) target = $region13
  $region12: #{basic_block_forward.7} parent=0 // pred_region
    _
  $region13: #{basic_block_forward.7} parent=0 // pred_fallthru
    _
  // Predicated region
  $region14: #{basic_block_forward.7} parent=0 // pred_check
    _
  $region15: #{basic_block_forward.7} parent=0 // pred_check_branch
    %18 = sbr.rel (0) target = $region17
  $region16: #{basic_block_forward.7} parent=0 // pred_region
    _
  $region17: #{basic_block_forward.7} parent=0 // pred_fallthru
    _
  // Predicated region
  $region18: #{basic_block_forward.7} parent=0 // pred_check
    _
  $region19: #{basic_block_forward.7} parent=0 // pred_check_branch
    %20 = sbr.rel (0) target = $region21
  $region20: #{basic_block_forward.7} parent=0 // pred_region
    _
  $region21: #{basic_block_forward.7} parent=0 // pred_fallthru
    _
  // Predicated region
  $region22: #{basic_block_forward.7} parent=0 // pred_check
    _
  $region23: #{basic_block_forward.7} parent=0 // pred_check_branch
    %22 = sbr.rel (0) target = $region25
  $region24: #{basic_block_forward.7} parent=0 // pred_region
    _
  $region25: #{basic_block_forward.7} parent=0 // pred_fallthru
    _
  %v23 = vld [vmem:[%s0] sm:$0xf]
  %v24 = vld [vmem:[%s0 + $0x4] sm:$0xf]
  %v25 = vld [vmem:[%s0 + $0x8] sm:$0xf]
  %v26 = vld [vmem:[%s0 + $0xc] sm:$0xf]
  %v27 = vld [vmem:[%s0 + $0x10] sm:$0xf]
  %v28 = vld [vmem:[%s0 + $0x14] sm:$0xf]
  %v29 = vld [vmem:[%s0 + $0x18] sm:$0xf]
  %v30 = vld [vmem:[%s0 + $0x1c] sm:$0xf]
  %v31 = vld [vmem:[%s0 + $0x20] sm:$0xf]
  %v32 = vld [vmem:[%s0 + $0x24] sm:$0xf]
  %v33 = vld [vmem:[%s0 + $0x28] sm:$0xf]
  %v34 = vld [vmem:[%s0 + $0x2c] sm:$0xf]
  %v35 = vld [vmem:[%s0 + $0x30] sm:$0xf]
  %v36 = vld [vmem:[%s0 + $0x34] sm:$0xf]
  %v37 = vld [vmem:[%s0 + $0x38] sm:$0xf]
  %v38 = vld [vmem:[%s0 + $0x3c] sm:$0xf]
  %v39 = vunpack.c.l.bf16 %v23
  %v40 = vunpack.c.l.bf16 %v24
  %v41 = vunpack.c.l.bf16 %v25
  %v42 = vunpack.c.l.bf16 %v26
  %v43 = vunpack.c.l.bf16 %v27
  %v44 = vunpack.c.l.bf16 %v28
  %v45 = vunpack.c.l.bf16 %v29
  %v46 = vunpack.c.l.bf16 %v30
  %v47 = vunpack.c.l.bf16 %v31
  %v48 = vunpack.c.l.bf16 %v32
  %v49 = vunpack.c.l.bf16 %v33
  %v50 = vunpack.c.l.bf16 %v34
  %v51 = vunpack.c.l.bf16 %v35
  %v52 = vunpack.c.l.bf16 %v36
  %v53 = vunpack.c.l.bf16 %v37
  %v54 = vunpack.c.l.bf16 %v38
  %v55 = vld [vmem:[%s2] sm:$0x1]
  %v57 = vlaneseq
  %v58 = vshrl.u32 %v57, 7
  %v59 = vsub.s32 0, %v58
  %v60 = vrot.slane %v55, %v59
  %v62 = vmul.f32 %v39, %v60
  %v63 = vmul.f32 %v40, %v60
  %v64 = vmul.f32 %v41, %v60
  %v65 = vmul.f32 %v42, %v60
  %v66 = vmul.f32 %v43, %v60
  %v67 = vmul.f32 %v44, %v60
  %v68 = vmul.f32 %v45, %v60
  %v69 = vmul.f32 %v46, %v60
  %v70 = vmul.f32 %v47, %v60
  %v71 = vmul.f32 %v48, %v60
  %v72 = vmul.f32 %v49, %v60
  %v73 = vmul.f32 %v50, %v60
  %v74 = vmul.f32 %v51, %v60
  %v75 = vmul.f32 %v52, %v60
  %v76 = vmul.f32 %v53, %v60
  %v77 = vmul.f32 %v54, %v60
  %v78 = vld [vmem:[%s3] sm:$0x1]
  %v80 = vlaneseq
  %v81 = vshrl.u32 %v80, 7
  %v82 = vsub.s32 0, %v81
  %v83 = vrot.slane %v78, %v82
  %v85 = vadd.f32 %v62, %v83
  %v86 = vadd.f32 %v63, %v83
  %v87 = vadd.f32 %v64, %v83
  %v88 = vadd.f32 %v65, %v83
  %v89 = vadd.f32 %v66, %v83
  %v90 = vadd.f32 %v67, %v83
  %v91 = vadd.f32 %v68, %v83
  %v92 = vadd.f32 %v69, %v83
  %v93 = vadd.f32 %v70, %v83
  %v94 = vadd.f32 %v71, %v83
  %v95 = vadd.f32 %v72, %v83
  %v96 = vadd.f32 %v73, %v83
  %v97 = vadd.f32 %v74, %v83
  %v98 = vadd.f32 %v75, %v83
  %v99 = vadd.f32 %v76, %v83
  %v100 = vadd.f32 %v77, %v83
  %v101 = vld [vmem:[%s1] sm:$0xf]
  %v102 = vld [vmem:[%s1 + $0x4] sm:$0xf]
  %v103 = vld [vmem:[%s1 + $0x8] sm:$0xf]
  %v104 = vld [vmem:[%s1 + $0xc] sm:$0xf]
  %v105 = vld [vmem:[%s1 + $0x10] sm:$0xf]
  %v106 = vld [vmem:[%s1 + $0x14] sm:$0xf]
  %v107 = vld [vmem:[%s1 + $0x18] sm:$0xf]
  %v108 = vld [vmem:[%s1 + $0x1c] sm:$0xf]
  %v109 = vld [vmem:[%s1 + $0x20] sm:$0xf]
  %v110 = vld [vmem:[%s1 + $0x24] sm:$0xf]
  %v111 = vld [vmem:[%s1 + $0x28] sm:$0xf]
  %v112 = vld [vmem:[%s1 + $0x2c] sm:$0xf]
  %v113 = vld [vmem:[%s1 + $0x30] sm:$0xf]
  %v114 = vld [vmem:[%s1 + $0x34] sm:$0xf]
  %v115 = vld [vmem:[%s1 + $0x38] sm:$0xf]
  %v116 = vld [vmem:[%s1 + $0x3c] sm:$0xf]
  %v117 = vunpack.c.l.bf16 %v101
  %v118 = vunpack.c.l.bf16 %v102
  %v119 = vunpack.c.l.bf16 %v103
  %v120 = vunpack.c.l.bf16 %v104
  %v121 = vunpack.c.l.bf16 %v105
  %v122 = vunpack.c.l.bf16 %v106
  %v123 = vunpack.c.l.bf16 %v107
  %v124 = vunpack.c.l.bf16 %v108
  %v125 = vunpack.c.l.bf16 %v109
  %v126 = vunpack.c.l.bf16 %v110
  %v127 = vunpack.c.l.bf16 %v111
  %v128 = vunpack.c.l.bf16 %v112
  %v129 = vunpack.c.l.bf16 %v113
  %v130 = vunpack.c.l.bf16 %v114
  %v131 = vunpack.c.l.bf16 %v115
  %v132 = vunpack.c.l.bf16 %v116
  %v133 = vld [vmem:[%s4] sm:$0x1]
  %v135 = vlaneseq
  %v136 = vshrl.u32 %v135, 7
  %v137 = vsub.s32 0, %v136
  %v138 = vrot.slane %v133, %v137
  %v140 = vmul.f32 %v117, %v138
  %v141 = vmul.f32 %v118, %v138
  %v142 = vmul.f32 %v119, %v138
  %v143 = vmul.f32 %v120, %v138
  %v144 = vmul.f32 %v121, %v138
  %v145 = vmul.f32 %v122, %v138
  %v146 = vmul.f32 %v123, %v138
  %v147 = vmul.f32 %v124, %v138
  %v148 = vmul.f32 %v125, %v138
  %v149 = vmul.f32 %v126, %v138
  %v150 = vmul.f32 %v127, %v138
  %v151 = vmul.f32 %v128, %v138
  %v152 = vmul.f32 %v129, %v138
  %v153 = vmul.f32 %v130, %v138
  %v154 = vmul.f32 %v131, %v138
  %v155 = vmul.f32 %v132, %v138
  %v156 = vld [vmem:[%s5] sm:$0x1]
  %v158 = vlaneseq
  %v159 = vshrl.u32 %v158, 7
  %v160 = vsub.s32 0, %v159
  %v161 = vrot.slane %v156, %v160
  %v163 = vadd.f32 %v140, %v161
  %v164 = vadd.f32 %v141, %v161
  %v165 = vadd.f32 %v142, %v161
  %v166 = vadd.f32 %v143, %v161
  %v167 = vadd.f32 %v144, %v161
  %v168 = vadd.f32 %v145, %v161
  %v169 = vadd.f32 %v146, %v161
  %v170 = vadd.f32 %v147, %v161
  %v171 = vadd.f32 %v148, %v161
  %v172 = vadd.f32 %v149, %v161
  %v173 = vadd.f32 %v150, %v161
  %v174 = vadd.f32 %v151, %v161
  %v175 = vadd.f32 %v152, %v161
  %v176 = vadd.f32 %v153, %v161
  %v177 = vadd.f32 %v154, %v161
  %v178 = vadd.f32 %v155, %v161
  %v179 = vadd.f32 %v85, %v163
  %v180 = vadd.f32 %v86, %v164
  %v181 = vadd.f32 %v87, %v165
  %v182 = vadd.f32 %v88, %v166
  %v183 = vadd.f32 %v89, %v167
  %v184 = vadd.f32 %v90, %v168
  %v185 = vadd.f32 %v91, %v169
  %v186 = vadd.f32 %v92, %v170
  %v187 = vadd.f32 %v93, %v171
  %v188 = vadd.f32 %v94, %v172
  %v189 = vadd.f32 %v95, %v173
  %v190 = vadd.f32 %v96, %v174
  %v191 = vadd.f32 %v97, %v175
  %v192 = vadd.f32 %v98, %v176
  %v193 = vadd.f32 %v99, %v177
  %v194 = vadd.f32 %v100, %v178
  %v195 = vmax.f32 %v179, 0.0
  %v196 = vmax.f32 %v180, 0.0
  %v197 = vmax.f32 %v181, 0.0
  %v198 = vmax.f32 %v182, 0.0
  %v199 = vmax.f32 %v183, 0.0
  %v200 = vmax.f32 %v184, 0.0
  %v201 = vmax.f32 %v185, 0.0
  %v202 = vmax.f32 %v186, 0.0
  %v203 = vmax.f32 %v187, 0.0
  %v204 = vmax.f32 %v188, 0.0
  %v205 = vmax.f32 %v189, 0.0
  %v206 = vmax.f32 %v190, 0.0
  %v207 = vmax.f32 %v191, 0.0
  %v208 = vmax.f32 %v192, 0.0
  %v209 = vmax.f32 %v193, 0.0
  %v210 = vmax.f32 %v194, 0.0
  %v211 = vpack.c.bf16 %v196, %v195
  %v212 = vpack.c.bf16 %v198, %v197
  %v213 = vpack.c.bf16 %v200, %v199
  %v214 = vpack.c.bf16 %v202, %v201
  %v215 = vpack.c.bf16 %v204, %v203
  %v216 = vpack.c.bf16 %v206, %v205
  %v217 = vpack.c.bf16 %v208, %v207
  %v218 = vpack.c.bf16 %v210, %v209
  %v227 = vunpack.c.l.b16 %v211
  %v228 = vunpack.c.h.b16 %v211
  %v229 = vunpack.c.l.b16 %v212
  %v230 = vunpack.c.h.b16 %v212
  %v231 = vunpack.c.l.b16 %v213
  %v232 = vunpack.c.h.b16 %v213
  %v233 = vunpack.c.l.b16 %v214
  %v234 = vunpack.c.h.b16 %v214
  %v235 = vunpack.c.l.b16 %v215
  %v236 = vunpack.c.h.b16 %v215
  %v237 = vunpack.c.l.b16 %v216
  %v238 = vunpack.c.h.b16 %v216
  %v239 = vunpack.c.l.b16 %v217
  %v240 = vunpack.c.h.b16 %v217
  %v241 = vunpack.c.l.b16 %v218
  %v242 = vunpack.c.h.b16 %v218
  %v243 = vpack.c.b16 %v227, %v227
  %v244 = vpack.c.b16 %v228, %v228
  %v245 = vpack.c.b16 %v229, %v229
  %v246 = vpack.c.b16 %v230, %v230
  %v247 = vpack.c.b16 %v231, %v231
  %v248 = vpack.c.b16 %v232, %v232
  %v249 = vpack.c.b16 %v233, %v233
  %v250 = vpack.c.b16 %v234, %v234
  %v251 = vpack.c.b16 %v235, %v235
  %v252 = vpack.c.b16 %v236, %v236
  %v253 = vpack.c.b16 %v237, %v237
  %v254 = vpack.c.b16 %v238, %v238
  %v255 = vpack.c.b16 %v239, %v239
  %v256 = vpack.c.b16 %v240, %v240
  %v257 = vpack.c.b16 %v241, %v241
  %v258 = vpack.c.b16 %v242, %v242
  %275 = vst [vmem:[%s6] sm:$0xf] %v243
  %276 = vst [vmem:[%s6 + $0x4] sm:$0xf] %v244
  %277 = vst [vmem:[%s6 + $0x8] sm:$0xf] %v245
  %278 = vst [vmem:[%s6 + $0xc] sm:$0xf] %v246
  %279 = vst [vmem:[%s6 + $0x10] sm:$0xf] %v247
  %280 = vst [vmem:[%s6 + $0x14] sm:$0xf] %v248
  %281 = vst [vmem:[%s6 + $0x18] sm:$0xf] %v249
  %282 = vst [vmem:[%s6 + $0x1c] sm:$0xf] %v250
  %283 = vst [vmem:[%s6 + $0x20] sm:$0xf] %v251
  %284 = vst [vmem:[%s6 + $0x24] sm:$0xf] %v252
  %285 = vst [vmem:[%s6 + $0x28] sm:$0xf] %v253
  %286 = vst [vmem:[%s6 + $0x2c] sm:$0xf] %v254
  %287 = vst [vmem:[%s6 + $0x30] sm:$0xf] %v255
  %288 = vst [vmem:[%s6 + $0x34] sm:$0xf] %v256
  %289 = vst [vmem:[%s6 + $0x38] sm:$0xf] %v257
  %290 = vst [vmem:[%s6 + $0x3c] sm:$0xf] %v258
  // Predicated region
  $region26: #{basic_block_forward.7} parent=0 // pred_check
    _
  $region27: #{basic_block_forward.7} parent=0 // pred_check_branch
    %292 = sbr.rel (0) target = $region29
  $region28: #{basic_block_forward.7} parent=0 // pred_region
    _
  $region29: #{basic_block_forward.7} parent=0 // pred_fallthru
    _
  // Predicated region
  $region30: #{basic_block_forward.7} parent=0 // pred_check
    _
  $region31: #{basic_block_forward.7} parent=0 // pred_check_branch
    %294 = sbr.rel (0) target = $region33
  $region32: #{basic_block_forward.7} parent=0 // pred_region
    _
  $region33: #{basic_block_forward.7} parent=0 // pred_fallthru
    _

</llo_original>
